<compile_context>
chip_gen: v6e
topology: v6e:2x2x1
jax: 0.10.0
libtpu: 0.0.40
codegen_flags: <defaults>
</compile_context>

<pallas_src>
import jax
import jax.numpy as jnp
from jax.experimental import pallas as pl
from jax.experimental.pallas import tpu as pltpu

H1 = 64     # fc1 / fc_1 output width
H2 = 128    # fc2 / fc3 width
OUT = 1     # fc4 output width


def _round_up(n, m):
    return ((n + m - 1) // m) * m


def critic_kernel(xy_ref,                 # (TB, state_dim+action_dim)
                  w1a_ref, b1a_ref,       # fused fc1/fc_1: (D_in, 128), (1, 128)
                  w2_ref, b2_ref,         # fc2: (128, 128), (1, 128)
                  w3_ref, b3_ref,         # fc3: (128, 128), (1, 128)
                  w4_ref, b4_ref,         # fc4 as a row: (1, 128), (1, 1)
                  out_ref):               # (TB, 1)
    # layer 1 (fused fc1 + fc_1 via block-diagonal weight): one lane-dense dot
    h1 = jnp.dot(xy_ref[...], w1a_ref[...], preferred_element_type=jnp.float32)
    h1 = jnp.maximum(h1 + b1a_ref[...], 0.0)

    # fc2 + relu (full 128x128 dot, no weight slicing)
    h2 = jnp.dot(h1.astype(w2_ref.dtype), w2_ref[...],
                 preferred_element_type=jnp.float32)
    h2 = jnp.maximum(h2 + b2_ref[...], 0.0)

    # fc3 + relu
    h3 = jnp.dot(h2.astype(w3_ref.dtype), w3_ref[...],
                 preferred_element_type=jnp.float32)
    h3 = jnp.maximum(h3 + b3_ref[...], 0.0)

    # fc4 (N=1): VPU multiply + cross-lane reduce instead of a 1-column MXU dot
    q = jnp.sum(h3 * w4_ref[...].astype(jnp.float32), axis=-1, keepdims=True)
    out_ref[...] = (q + b4_ref[...]).astype(out_ref.dtype)


def critic_forward(x, y, packed, *, tile_b=256):
    """x: (B, state_dim) f32, y: (B, action_dim) f32 -> (B, 1) f32."""
    w1a, b1a = packed["w1a"], packed["b1a"]
    w2, b2 = packed["w2"], packed["b2"]
    w3, b3 = packed["w3"], packed["b3"]
    w4, b4 = packed["w4"], packed["b4"]

    B = x.shape[0]
    xy = jnp.concatenate([x, y], axis=1).astype(w1a.dtype)   # (B, D_in)
    D_in = xy.shape[1]

    # batch tile: multiple of 8 (sublane), capped at tile_b; pad B up to it.
    tb = min(tile_b, _round_up(B, 8))
    Bp = _round_up(B, tb)
    if Bp != B:
        xy = jnp.pad(xy, ((0, Bp - B), (0, 0)))

    const = lambda i: (0, 0)   # weights: resident across all grid steps
    out = pl.pallas_call(
        critic_kernel,
        out_shape=jax.ShapeDtypeStruct((Bp, OUT), jnp.float32),
        grid=(Bp // tb,),
        in_specs=[
            pl.BlockSpec((tb, D_in), lambda i: (i, 0)),
            pl.BlockSpec(w1a.shape, const),
            pl.BlockSpec(b1a.shape, const),
            pl.BlockSpec(w2.shape, const),
            pl.BlockSpec(b2.shape, const),
            pl.BlockSpec(w3.shape, const),
            pl.BlockSpec(b3.shape, const),
            pl.BlockSpec(w4.shape, const),
            pl.BlockSpec(b4.shape, const),
        ],
        out_specs=pl.BlockSpec((tb, OUT), lambda i: (i, 0)),
        compiler_params=pltpu.CompilerParams(
            dimension_semantics=("parallel",)),   # v7x: shard batch over 2 TCs
    )(xy, w1a, b1a, w2, b2, w3, b3, w4, b4)
    return out[:B]


def init_params(key, state_dim, action_dim):
    """Deterministic synthetic parameters (shapes match the torch module)."""
    ks = jax.random.split(key, 10)

    def lin(kw, kb, fan_in, fan_out):
        bound = 1.0 / jnp.sqrt(fan_in)
        w = jax.random.uniform(kw, (fan_in, fan_out), jnp.float32, -bound, bound)
        b = jax.random.uniform(kb, (1, fan_out), jnp.float32, -bound, bound)
        return w, b

    w1, b1 = lin(ks[0], ks[1], state_dim, H1)
    wa, ba = lin(ks[2], ks[3], action_dim, H1)
    w2, b2 = lin(ks[4], ks[5], 2 * H1, H2)
    w3, b3 = lin(ks[6], ks[7], H2, H2)
    w4, b4 = lin(ks[8], ks[9], H2, OUT)
    return dict(w1=w1, b1=b1, wa=wa, ba=ba, w2=w2, b2=b2,
                w3=w3, b3=b3, w4=w4, b4=b4)


def pack_params(params, dtype=jnp.float32):
    """Prepack weights for the fused kernel.

    - w1a: block-diagonal (state_dim+action_dim, 128) so layer 1 is one dot
      on the pre-concatenated [x, y] input:
        cols 0:64  <- fc1 weight (rows 0:state_dim), zeros below
        cols 64:128<- fc_1 weight (rows state_dim:), zeros above
    - w4 is stored as a (1, 128) row for the VPU reduce.
    - Weights take `dtype` (e.g. bf16 for v6e/v7x inference); biases stay f32.
    """
    state_dim = params["w1"].shape[0]
    action_dim = params["wa"].shape[0]
    D_in = state_dim + action_dim

    w1a = jnp.zeros((D_in, 2 * H1), jnp.float32)
    w1a = w1a.at[:state_dim, :H1].set(params["w1"])
    w1a = w1a.at[state_dim:, H1:].set(params["wa"])
    b1a = jnp.concatenate([params["b1"], params["ba"]], axis=1)   # (1, 128)

    return dict(
        w1a=w1a.astype(dtype), b1a=b1a.astype(jnp.float32),
        w2=params["w2"].astype(dtype), b2=params["b2"].astype(jnp.float32),
        w3=params["w3"].astype(dtype), b3=params["b3"].astype(jnp.float32),
        w4=params["w4"].T.astype(jnp.float32),                    # (1, 128)
        b4=params["b4"].astype(jnp.float32),                      # (1, 1)
    )


def critic_ref(x, y, p):
    """Pure-JAX reference mirroring the torch forward."""
    hx = jax.nn.relu(x @ p["w1"] + p["b1"])
    hy = jax.nn.relu(y @ p["wa"] + p["ba"])
    h = jnp.concatenate([hx, hy], axis=1)          # torch.cat dim=1
    h = jax.nn.relu(h @ p["w2"] + p["b2"])
    h = jax.nn.relu(h @ p["w3"] + p["b3"])
    return h @ p["w4"] + p["b4"]


if __name__ == "__main__":
    key = jax.random.PRNGKey(0)
    k_p, k_x, k_y, k_x2, k_y2 = jax.random.split(key, 5)

    state_dim = 16  # env.observation_space.shape[0] (synthetic)
    action_dim = 4  # env.action_space.shape[0]      (synthetic)

    params = init_params(k_p, state_dim, action_dim)
    packed = pack_params(params)   # f32; use dtype=jnp.bfloat16 for v6e/v7x inference

    # small-batch check (single grid step)
    B = 8
    x = jax.random.normal(k_x, (B, state_dim), jnp.float32)
    y = jax.random.normal(k_y, (B, action_dim), jnp.float32)
    out = jax.block_until_ready(critic_forward(x, y, packed))
    ref = critic_ref(x, y, params)
    assert out.shape == (B, 1), out.shape
    assert jnp.allclose(out, ref, atol=1e-4, rtol=1e-4), (
        f"max abs err {jnp.max(jnp.abs(out - ref))}")

    # larger batch: exercises the batch grid (multiple tiles) + padding path
    B2 = 1000
    x2 = jax.random.normal(k_x2, (B2, state_dim), jnp.float32)
    y2 = jax.random.normal(k_y2, (B2, action_dim), jnp.float32)
    out2 = jax.block_until_ready(critic_forward(x2, y2, packed, tile_b=256))
    ref2 = critic_ref(x2, y2, params)
    assert out2.shape == (B2, 1), out2.shape
    assert jnp.allclose(out2, ref2, atol=1e-4, rtol=1e-4), (
        f"max abs err {jnp.max(jnp.abs(out2 - ref2))}")

    print("KERNEL_OK")
</pallas_src>

<mosaic_0001>
module attributes {stable_mosaic.version = 11 : i64} {
  func.func @critic_kernel(%arg0: i32, %arg1: memref<8x20xf32, #tpu.memory_space<vmem>>, %arg2: memref<20x128xf32, #tpu.memory_space<vmem>>, %arg3: memref<1x128xf32, #tpu.memory_space<vmem>>, %arg4: memref<128x128xf32, #tpu.memory_space<vmem>>, %arg5: memref<1x128xf32, #tpu.memory_space<vmem>>, %arg6: memref<128x128xf32, #tpu.memory_space<vmem>>, %arg7: memref<1x128xf32, #tpu.memory_space<vmem>>, %arg8: memref<1x128xf32, #tpu.memory_space<vmem>>, %arg9: memref<1x1xf32, #tpu.memory_space<vmem>>, %arg10: memref<8x1xf32, #tpu.memory_space<vmem>>) attributes {dimension_semantics = [#tpu.dimension_semantics<parallel>], iteration_bounds = array<i64: 1>, scalar_prefetch = 0 : i64, scratch_operands = 0 : i64, tpu.core_type = #tpu.core_type<tc>, window_params = [{transform_indices = @transform_0, window_bounds = array<i64: 8, 20>}, {pipeline_mode = #tpu.pipeline_mode<synchronous>, transform_indices = @transform_1, window_bounds = array<i64: 20, 128>}, {pipeline_mode = #tpu.pipeline_mode<synchronous>, transform_indices = @transform_2, window_bounds = array<i64: 1, 128>}, {pipeline_mode = #tpu.pipeline_mode<synchronous>, transform_indices = @transform_3, window_bounds = array<i64: 128, 128>}, {pipeline_mode = #tpu.pipeline_mode<synchronous>, transform_indices = @transform_4, window_bounds = array<i64: 1, 128>}, {pipeline_mode = #tpu.pipeline_mode<synchronous>, transform_indices = @transform_5, window_bounds = array<i64: 128, 128>}, {pipeline_mode = #tpu.pipeline_mode<synchronous>, transform_indices = @transform_6, window_bounds = array<i64: 1, 128>}, {pipeline_mode = #tpu.pipeline_mode<synchronous>, transform_indices = @transform_7, window_bounds = array<i64: 1, 128>}, {pipeline_mode = #tpu.pipeline_mode<synchronous>, transform_indices = @transform_8, window_bounds = array<i64: 1, 1>}, {transform_indices = @transform_9, window_bounds = array<i64: 8, 1>}]} {
    %c0 = arith.constant 0 : index
    %c0_0 = arith.constant 0 : index
    %0 = vector.load %arg1[%c0, %c0_0] : memref<8x20xf32, #tpu.memory_space<vmem>>, vector<8x20xf32>
    %c0_1 = arith.constant 0 : index
    %c0_2 = arith.constant 0 : index
    %1 = vector.load %arg2[%c0_1, %c0_2] : memref<20x128xf32, #tpu.memory_space<vmem>>, vector<20x128xf32>
    %cst = arith.constant dense<0.000000e+00> : vector<8x128xf32>
    %2 = tpu.matmul %0, %1, %cst {dimension_numbers = #tpu.dot_dimension_numbers<[1], [0], [0], [1], [0, 0, 1, 1], [], []>} : vector<8x20xf32>, vector<20x128xf32>, vector<8x128xf32> -> vector<8x128xf32>
    %c0_3 = arith.constant 0 : index
    %c0_4 = arith.constant 0 : index
    %3 = vector.load %arg3[%c0_3, %c0_4] : memref<1x128xf32, #tpu.memory_space<vmem>>, vector<1x128xf32>
    %4 = vector.broadcast %3 : vector<1x128xf32> to vector<8x128xf32>
    %5 = arith.addf %2, %4 : vector<8x128xf32>
    %cst_5 = arith.constant 0.000000e+00 : f32
    %6 = vector.broadcast %cst_5 : f32 to vector<8x128xf32>
    %7 = arith.maximumf %5, %6 : vector<8x128xf32>
    %c0_6 = arith.constant 0 : index
    %c0_7 = arith.constant 0 : index
    %8 = vector.load %arg4[%c0_6, %c0_7] : memref<128x128xf32, #tpu.memory_space<vmem>>, vector<128x128xf32>
    %cst_8 = arith.constant dense<0.000000e+00> : vector<8x128xf32>
    %9 = tpu.matmul %7, %8, %cst_8 {dimension_numbers = #tpu.dot_dimension_numbers<[1], [0], [0], [1], [0, 0, 1, 1], [], []>} : vector<8x128xf32>, vector<128x128xf32>, vector<8x128xf32> -> vector<8x128xf32>
    %c0_9 = arith.constant 0 : index
    %c0_10 = arith.constant 0 : index
    %10 = vector.load %arg5[%c0_9, %c0_10] : memref<1x128xf32, #tpu.memory_space<vmem>>, vector<1x128xf32>
    %11 = vector.broadcast %10 : vector<1x128xf32> to vector<8x128xf32>
    %12 = arith.addf %9, %11 : vector<8x128xf32>
    %cst_11 = arith.constant 0.000000e+00 : f32
    %13 = vector.broadcast %cst_11 : f32 to vector<8x128xf32>
    %14 = arith.maximumf %12, %13 : vector<8x128xf32>
    %c0_12 = arith.constant 0 : index
    %c0_13 = arith.constant 0 : index
    %15 = vector.load %arg6[%c0_12, %c0_13] : memref<128x128xf32, #tpu.memory_space<vmem>>, vector<128x128xf32>
    %cst_14 = arith.constant dense<0.000000e+00> : vector<8x128xf32>
    %16 = tpu.matmul %14, %15, %cst_14 {dimension_numbers = #tpu.dot_dimension_numbers<[1], [0], [0], [1], [0, 0, 1, 1], [], []>} : vector<8x128xf32>, vector<128x128xf32>, vector<8x128xf32> -> vector<8x128xf32>
    %c0_15 = arith.constant 0 : index
    %c0_16 = arith.constant 0 : index
    %17 = vector.load %arg7[%c0_15, %c0_16] : memref<1x128xf32, #tpu.memory_space<vmem>>, vector<1x128xf32>
    %18 = vector.broadcast %17 : vector<1x128xf32> to vector<8x128xf32>
    %19 = arith.addf %16, %18 : vector<8x128xf32>
    %cst_17 = arith.constant 0.000000e+00 : f32
    %20 = vector.broadcast %cst_17 : f32 to vector<8x128xf32>
    %21 = arith.maximumf %19, %20 : vector<8x128xf32>
    %c0_18 = arith.constant 0 : index
    %c0_19 = arith.constant 0 : index
    %22 = vector.load %arg8[%c0_18, %c0_19] : memref<1x128xf32, #tpu.memory_space<vmem>>, vector<1x128xf32>
    %23 = vector.broadcast %22 : vector<1x128xf32> to vector<8x128xf32>
    %24 = arith.mulf %21, %23 : vector<8x128xf32>
    %cst_20 = arith.constant dense<0.000000e+00> : vector<8xf32>
    %25 = vector.multi_reduction <add>, %24, %cst_20 [1] : vector<8x128xf32> to vector<8xf32>
    %26 = vector.shape_cast %25 : vector<8xf32> to vector<8x1xf32>
    %c0_21 = arith.constant 0 : index
    %c0_22 = arith.constant 0 : index
    %27 = vector.load %arg9[%c0_21, %c0_22] : memref<1x1xf32, #tpu.memory_space<vmem>>, vector<1x1xf32>
    %28 = vector.broadcast %27 : vector<1x1xf32> to vector<8x1xf32>
    %29 = arith.addf %26, %28 : vector<8x1xf32>
    %c0_23 = arith.constant 0 : index
    %c0_24 = arith.constant 0 : index
    %30 = vector.load %arg10[%c0_23, %c0_24] : memref<8x1xf32, #tpu.memory_space<vmem>>, vector<8x1xf32>
    tpu.vector_store %arg10[%c0_23, %c0_24], %29 {strides = array<i32>} : memref<8x1xf32, #tpu.memory_space<vmem>>, vector<8x1xf32>,
    return
  }
  func.func @transform_0(%arg0: i32) -> (i32, i32) {
    %c0_i32 = arith.constant 0 : i32
    %c0_i32_0 = arith.constant 0 : i32
    return %arg0, %c0_i32 : i32, i32
  }
  func.func @transform_1(%arg0: i32) -> (i32, i32) {
    %c0_i32 = arith.constant 0 : i32
    %c0_i32_0 = arith.constant 0 : i32
    %c0_i32_1 = arith.constant 0 : i32
    return %c0_i32, %c0_i32_0 : i32, i32
  }
  func.func @transform_2(%arg0: i32) -> (i32, i32) {
    %c0_i32 = arith.constant 0 : i32
    %c0_i32_0 = arith.constant 0 : i32
    %c0_i32_1 = arith.constant 0 : i32
    return %c0_i32, %c0_i32_0 : i32, i32
  }
  func.func @transform_3(%arg0: i32) -> (i32, i32) {
    %c0_i32 = arith.constant 0 : i32
    %c0_i32_0 = arith.constant 0 : i32
    %c0_i32_1 = arith.constant 0 : i32
    return %c0_i32, %c0_i32_0 : i32, i32
  }
  func.func @transform_4(%arg0: i32) -> (i32, i32) {
    %c0_i32 = arith.constant 0 : i32
    %c0_i32_0 = arith.constant 0 : i32
    %c0_i32_1 = arith.constant 0 : i32
    return %c0_i32, %c0_i32_0 : i32, i32
  }
  func.func @transform_5(%arg0: i32) -> (i32, i32) {
    %c0_i32 = arith.constant 0 : i32
    %c0_i32_0 = arith.constant 0 : i32
    %c0_i32_1 = arith.constant 0 : i32
    return %c0_i32, %c0_i32_0 : i32, i32
  }
  func.func @transform_6(%arg0: i32) -> (i32, i32) {
    %c0_i32 = arith.constant 0 : i32
    %c0_i32_0 = arith.constant 0 : i32
    %c0_i32_1 = arith.constant 0 : i32
    return %c0_i32, %c0_i32_0 : i32, i32
  }
  func.func @transform_7(%arg0: i32) -> (i32, i32) {
    %c0_i32 = arith.constant 0 : i32
    %c0_i32_0 = arith.constant 0 : i32
    %c0_i32_1 = arith.constant 0 : i32
    return %c0_i32, %c0_i32_0 : i32, i32
  }
  func.func @transform_8(%arg0: i32) -> (i32, i32) {
    %c0_i32 = arith.constant 0 : i32
    %c0_i32_0 = arith.constant 0 : i32
    %c0_i32_1 = arith.constant 0 : i32
    return %c0_i32, %c0_i32_0 : i32, i32
  }
  func.func @transform_9(%arg0: i32) -> (i32, i32) {
    %c0_i32 = arith.constant 0 : i32
    %c0_i32_0 = arith.constant 0 : i32
    return %arg0, %c0_i32 : i32, i32
  }
}

</mosaic_0001>

<llo_original>
// kernel: tpu_custom_call.1
$region0: #{tpu_custom_call.1}
  #allocation0 [shape = 'u32[]', space=smem, size = 0x4, offset = 0x4, fixed_abs, tag = 'smem constant byte address 0x4 - core index']
  #allocation1 [shape = 'u32[144,128]{1,0:T(1,128)}', space=vmem, size = 0x12000, scoped, tag = 'internal scratch']
  #allocation2 [shape = 'f32[1,1]{1,0:T(1,128)S(1)}', space=vmem, size = 0x200, scoped, tag = 'scoped memory for tpu_custom_call.1']
  %s0 = inlined_call_operand.hbm [shape: f32[8,20], index: 0, kind: input, shape index: {}]
  %s1 = inlined_call_operand.hbm [shape: f32[20,128], index: 1, kind: input, shape index: {}]
  %s2 = inlined_call_operand.vmem [shape: f32[1,128], index: 2, kind: input, shape index: {}]
  %s3 = inlined_call_operand.hbm [shape: f32[128,128], index: 3, kind: input, shape index: {}]
  %s4 = inlined_call_operand.vmem [shape: f32[1,128], index: 4, kind: input, shape index: {}]
  %s5 = inlined_call_operand.hbm [shape: f32[128,128], index: 5, kind: input, shape index: {}]
  %s6 = inlined_call_operand.vmem [shape: f32[1,128], index: 6, kind: input, shape index: {}]
  %s7 = inlined_call_operand.vmem [shape: f32[1,128], index: 7, kind: input, shape index: {}]
  %s8 = inlined_call_operand.<no memory space> [shape: f32[1,1], index: 8, kind: input, shape index: {}]
  %s9 = inlined_call_operand.vmem [shape: f32[8,1], index: 9, kind: output, shape index: {}]
  %s10 = sld [smem:[#allocation0]]
  $region62: #{tpu_custom_call.1} parent=0
    _
  %s12 = ssub.s32 1, %s10
  %s13 = scalar_select 0, %s12, %s10
  %v14 = vstv %s8
  %15 = vst [vmem:[#allocation2] sm:$0x1] %v14
  $region1: #{tpu_custom_call.1} parent=0
    #allocation3 [shape = 'u8[4096]{0}', space=vmem, size = 0x1000, scoped, tag = 'input window, operand 0, single buffered']
    #allocation4 [shape = 's32[1]{0}', space=sflag, size = 0x4, scoped, tag = 'scoped memory for tpu_custom_call.1']
    #allocation5 [shape = 'u8[12288]{0}', space=vmem, size = 0x3000, scoped, tag = 'input window, operand 1, single buffered']
    #allocation6 [shape = 's32[1]{0}', space=sflag, size = 0x4, scoped, tag = 'scoped memory for tpu_custom_call.1']
    #allocation7 [shape = 'u8[65536]{0}', space=vmem, size = 0x10000, scoped, tag = 'input window, operand 3, single buffered']
    #allocation8 [shape = 'u8[65536]{0}', space=vmem, size = 0x10000, scoped, tag = 'input window, operand 5, single buffered']
    #allocation9 [shape = 's32[1]{0}', space=sflag, size = 0x4, scoped, tag = 'scoped memory for tpu_custom_call.1']
    %16 = vsyncpa [#allocation4], 0
    %17 = vsyncpa [#allocation6], 0
    %18 = vsyncpa [#allocation9], 0
    // Predicated region
    $region2: #{tpu_custom_call.1} parent=1 // pred_check
      _
    $region3: #{tpu_custom_call.1} parent=1 // pred_check_branch
      %20 = sbr.rel (0) target = $region5
    $region4: #{tpu_custom_call.1} parent=1 // pred_region
      %s22 = ssub.s32 128, 128
      %23 = vsyncadd [#allocation4], %s22
      %s25 = sshll.u32 [#allocation3], 4
      %s26 = int_to_ptr.vmem [resolvable:$true] %s25
      %28 = dma.hbm_to_vmem [thread:$0]  %s0, 128, %s26, [#allocation4]
    $region5: #{tpu_custom_call.1} parent=1 // pred_fallthru
      _
    // Predicated region
    $region6: #{tpu_custom_call.1} parent=1 // pred_check
      _
    $region7: #{tpu_custom_call.1} parent=1 // pred_check_branch
      %30 = sbr.rel (0) target = $region9
    $region8: #{tpu_custom_call.1} parent=1 // pred_region
      %s32 = ssub.s32 384, 384
      %33 = vsyncadd [#allocation6], %s32
      %s34 = sshll.u32 [#allocation5], 4
      %s35 = int_to_ptr.vmem [resolvable:$true] %s34
      %40 = dma.hbm_to_vmem [thread:$0]  %s1, 384, %s35, [#allocation6], 128, 128, 8
    $region9: #{tpu_custom_call.1} parent=1 // pred_fallthru
      _
    // Predicated region
    $region10: #{tpu_custom_call.1} parent=1 // pred_check
      _
    $region11: #{tpu_custom_call.1} parent=1 // pred_check_branch
      %42 = sbr.rel (0) target = $region13
    $region12: #{tpu_custom_call.1} parent=1 // pred_region
      _
    $region13: #{tpu_custom_call.1} parent=1 // pred_fallthru
      _
    // Predicated region
    $region14: #{tpu_custom_call.1} parent=1 // pred_check
      _
    $region15: #{tpu_custom_call.1} parent=1 // pred_check_branch
      %44 = sbr.rel (0) target = $region17
    $region16: #{tpu_custom_call.1} parent=1 // pred_region
      %s46 = ssub.s32 2048, 2048
      %47 = vsyncadd [#allocation6], %s46
      %s48 = sshll.u32 [#allocation7], 4
      %s49 = int_to_ptr.vmem [resolvable:$true] %s48
      %54 = dma.hbm_to_vmem [thread:$0]  %s3, 2048, %s49, [#allocation6], 128, 128, 8
    $region17: #{tpu_custom_call.1} parent=1 // pred_fallthru
      _
    // Predicated region
    $region18: #{tpu_custom_call.1} parent=1 // pred_check
      _
    $region19: #{tpu_custom_call.1} parent=1 // pred_check_branch
      %56 = sbr.rel (0) target = $region21
    $region20: #{tpu_custom_call.1} parent=1 // pred_region
      _
    $region21: #{tpu_custom_call.1} parent=1 // pred_fallthru
      _
    // Predicated region
    $region22: #{tpu_custom_call.1} parent=1 // pred_check
      _
    $region23: #{tpu_custom_call.1} parent=1 // pred_check_branch
      %58 = sbr.rel (0) target = $region25
    $region24: #{tpu_custom_call.1} parent=1 // pred_region
      %s60 = ssub.s32 2048, 2048
      %61 = vsyncadd [#allocation9], %s60
      %s62 = sshll.u32 [#allocation8], 4
      %s63 = int_to_ptr.vmem [resolvable:$true] %s62
      %68 = dma.hbm_to_vmem [thread:$0]  %s5, 2048, %s63, [#allocation9], 128, 128, 8
    $region25: #{tpu_custom_call.1} parent=1 // pred_fallthru
      _
    // Predicated region
    $region26: #{tpu_custom_call.1} parent=1 // pred_check
      _
    $region27: #{tpu_custom_call.1} parent=1 // pred_check_branch
      %70 = sbr.rel (0) target = $region29
    $region28: #{tpu_custom_call.1} parent=1 // pred_region
      _
    $region29: #{tpu_custom_call.1} parent=1 // pred_fallthru
      _
    // Predicated region
    $region30: #{tpu_custom_call.1} parent=1 // pred_check
      _
    $region31: #{tpu_custom_call.1} parent=1 // pred_check_branch
      %72 = sbr.rel (0) target = $region33
    $region32: #{tpu_custom_call.1} parent=1 // pred_region
      _
    $region33: #{tpu_custom_call.1} parent=1 // pred_fallthru
      _
    // Predicated region
    $region34: #{tpu_custom_call.1} parent=1 // pred_check
      _
    $region35: #{tpu_custom_call.1} parent=1 // pred_check_branch
      %74 = sbr.rel (0) target = $region37
    $region36: #{tpu_custom_call.1} parent=1 // pred_region
      _
    $region37: #{tpu_custom_call.1} parent=1 // pred_fallthru
      _
    // Predicated region
    $region38: #{tpu_custom_call.1} parent=1 // pred_check
      _
    $region39: #{tpu_custom_call.1} parent=1 // pred_check_branch
      %76 = sbr.rel (0) target = $region41
    $region40: #{tpu_custom_call.1} parent=1 // pred_region
      %77 = dma.done [#allocation4], 128
    $region41: #{tpu_custom_call.1} parent=1 // pred_fallthru
      _
    // Predicated region
    $region42: #{tpu_custom_call.1} parent=1 // pred_check
      _
    $region43: #{tpu_custom_call.1} parent=1 // pred_check_branch
      %79 = sbr.rel (0) target = $region45
    $region44: #{tpu_custom_call.1} parent=1 // pred_region
      %80 = dma.done [#allocation6], 384
    $region45: #{tpu_custom_call.1} parent=1 // pred_fallthru
      _
    // Predicated region
    $region46: #{tpu_custom_call.1} parent=1 // pred_check
      _
    $region47: #{tpu_custom_call.1} parent=1 // pred_check_branch
      %82 = sbr.rel (0) target = $region49
    $region48: #{tpu_custom_call.1} parent=1 // pred_region
      %83 = dma.done [#allocation6], 2048
    $region49: #{tpu_custom_call.1} parent=1 // pred_fallthru
      _
    // Predicated region
    $region50: #{tpu_custom_call.1} parent=1 // pred_check
      _
    $region51: #{tpu_custom_call.1} parent=1 // pred_check_branch
      %85 = sbr.rel (0) target = $region53
    $region52: #{tpu_custom_call.1} parent=1 // pred_region
      %86 = dma.done [#allocation9], 2048
    $region53: #{tpu_custom_call.1} parent=1 // pred_fallthru
      _
    %v87 = vld [vmem:[#allocation3] sm:$0xff]
    %v88 = vld [vmem:[#allocation5] sm:$0xff]
    %v89 = vld [vmem:[#allocation5 + $0x8] sm:$0xff]
    %v90 = vld [vmem:[#allocation5 + $0x10] sm:$0xf]
    %v91 = vld [vmem:[%s2] sm:$0x1]
    %v93 = vlaneseq
    %v94 = vshrl.u32 %v93, 7
    %v95 = vsub.s32 0, %v94
    %v96 = vrot.slane %v91, %v95
    %vm98 = vcmask 162816
    %v100 = vsel %vm98, %v87, 0
    %vm102 = vcmask 1043456
    %v104 = vsel %vm102, %v90, 0
    %106 = vmatprep.subr.mxu0 0.0
    %107 = vmatpush1.msra.mxu0 0.0
    %108 = vmatprep.subr.mxu0 0.0
    %109 = vmatpush1.msra.mxu0 0.0
    %110 = vmatprep.subr.mxu0 0.0
    %111 = vmatpush1.msra.mxu0 0.0
    %112 = vmatprep.subr.mxu0 0.0
    %113 = vmatpush1.msra.mxu0 0.0
    %114 = vmatprep.subr.mxu0 0.0
    %115 = vmatpush1.msra.mxu0 0.0
    %116 = vmatprep.subr.mxu0 0.0
    %117 = vmatpush1.msra.mxu0 0.0
    %118 = vmatprep.subr.mxu0 0.0
    %119 = vmatpush1.msra.mxu0 0.0
    %120 = vmatprep.subr.mxu0 0.0
    %121 = vmatpush1.msra.mxu0 0.0
    %122 = vmatprep.subr.mxu0 0.0
    %123 = vmatpush1.msra.mxu0 0.0
    %124 = vmatprep.subr.mxu0 0.0
    %125 = vmatpush1.msra.mxu0 0.0
    %126 = vmatprep.subr.mxu0 0.0
    %127 = vmatpush1.msra.mxu0 0.0
    %128 = vmatprep.subr.mxu0 0.0
    %129 = vmatpush1.msra.mxu0 0.0
    %130 = vmatprep.subr.mxu0 0.0
    %131 = vmatpush1.msra.mxu0 0.0
    %132 = vmatprep.subr.mxu0 0.0
    %133 = vmatpush1.msra.mxu0 %v104
    %134 = vmatprep.subr.mxu0 0.0
    %135 = vmatpush1.msra.mxu0 %v89
    %136 = vmatprep.subr.mxu0 0.0
    %137 = vmatpush1.msra.mxu0 %v88
    %138 = vmatprep.subr.mxu0 0.0
    %139 = vmatpush2.msra.mxu0 0.0
    %140 = vmatprep.subr.mxu0 0.0
    %141 = vmatpush2.msra.mxu0 0.0
    %142 = vmatprep.subr.mxu0 0.0
    %143 = vmatpush2.msra.mxu0 0.0
    %144 = vmatprep.subr.mxu0 0.0
    %145 = vmatpush2.msra.mxu0 0.0
    %146 = vmatprep.subr.mxu0 0.0
    %147 = vmatpush2.msra.mxu0 0.0
    %148 = vmatprep.subr.mxu0 0.0
    %149 = vmatpush2.msra.mxu0 0.0
    %150 = vmatprep.subr.mxu0 0.0
    %151 = vmatpush2.msra.mxu0 0.0
    %152 = vmatprep.subr.mxu0 0.0
    %153 = vmatpush2.msra.mxu0 0.0
    %154 = vmatprep.subr.mxu0 0.0
    %155 = vmatpush2.msra.mxu0 0.0
    %156 = vmatprep.subr.mxu0 0.0
    %157 = vmatpush2.msra.mxu0 0.0
    %158 = vmatprep.subr.mxu0 0.0
    %159 = vmatpush2.msra.mxu0 0.0
    %160 = vmatprep.subr.mxu0 0.0
    %161 = vmatpush2.msra.mxu0 0.0
    %162 = vmatprep.subr.mxu0 0.0
    %163 = vmatpush2.msra.mxu0 0.0
    %164 = vmatprep.subr.mxu0 0.0
    %165 = vmatpush2.msra.mxu0 0.0
    %166 = vmatprep.subr.mxu0 0.0
    %167 = vmatpush2.msra.mxu0 0.0
    %168 = vmatprep.subr.mxu0 0.0
    %169 = vmatpush2.msra.mxu0 0.0
    %170 = vmatprep.mubr.f32.mxu0 0.0
    %171 = vmatmul.mubr.f32.gmra.mxu0 %v100
    %v172 = vpop.f32.mrf.mxu0
    %v173 = vadd.f32 %v96, %v172
    %v174 = vpop.f32.mrf.mxu0
    %175 = vdwg.mxu0
    %v176 = vmax.f32 %v173, 0.0
    %v177 = vld [vmem:[#allocation7] sm:$0xff]
    %v178 = vld [vmem:[#allocation7 + $0x8] sm:$0xff]
    %v179 = vld [vmem:[#allocation7 + $0x10] sm:$0xff]
    %v180 = vld [vmem:[#allocation7 + $0x18] sm:$0xff]
    %v181 = vld [vmem:[#allocation7 + $0x20] sm:$0xff]
    %v182 = vld [vmem:[#allocation7 + $0x28] sm:$0xff]
    %v183 = vld [vmem:[#allocation7 + $0x30] sm:$0xff]
    %v184 = vld [vmem:[#allocation7 + $0x38] sm:$0xff]
    %v185 = vld [vmem:[#allocation7 + $0x40] sm:$0xff]
    %v186 = vld [vmem:[#allocation7 + $0x48] sm:$0xff]
    %v187 = vld [vmem:[#allocation7 + $0x50] sm:$0xff]
    %v188 = vld [vmem:[#allocation7 + $0x58] sm:$0xff]
    %v189 = vld [vmem:[#allocation7 + $0x60] sm:$0xff]
    %v190 = vld [vmem:[#allocation7 + $0x68] sm:$0xff]
    %v191 = vld [vmem:[#allocation7 + $0x70] sm:$0xff]
    %v192 = vld [vmem:[#allocation7 + $0x78] sm:$0xff]
    %v193 = vld [vmem:[%s4] sm:$0x1]
    %v195 = vlaneseq
    %v196 = vshrl.u32 %v195, 7
    %v197 = vsub.s32 0, %v196
    %v198 = vrot.slane %v193, %v197
    %200 = vmatprep.subr.mxu0 0.0
    %201 = vmatpush1.msra.mxu0 %v192
    %202 = vmatprep.subr.mxu0 0.0
    %203 = vmatpush1.msra.mxu0 %v191
    %204 = vmatprep.subr.mxu0 0.0
    %205 = vmatpush1.msra.mxu0 %v190
    %206 = vmatprep.subr.mxu0 0.0
    %207 = vmatpush1.msra.mxu0 %v189
    %208 = vmatprep.subr.mxu0 0.0
    %209 = vmatpush1.msra.mxu0 %v188
    %210 = vmatprep.subr.mxu0 0.0
    %211 = vmatpush1.msra.mxu0 %v187
    %212 = vmatprep.subr.mxu0 0.0
    %213 = vmatpush1.msra.mxu0 %v186
    %214 = vmatprep.subr.mxu0 0.0
    %215 = vmatpush1.msra.mxu0 %v185
    %216 = vmatprep.subr.mxu0 0.0
    %217 = vmatpush1.msra.mxu0 %v184
    %218 = vmatprep.subr.mxu0 0.0
    %219 = vmatpush1.msra.mxu0 %v183
    %220 = vmatprep.subr.mxu0 0.0
    %221 = vmatpush1.msra.mxu0 %v182
    %222 = vmatprep.subr.mxu0 0.0
    %223 = vmatpush1.msra.mxu0 %v181
    %224 = vmatprep.subr.mxu0 0.0
    %225 = vmatpush1.msra.mxu0 %v180
    %226 = vmatprep.subr.mxu0 0.0
    %227 = vmatpush1.msra.mxu0 %v179
    %228 = vmatprep.subr.mxu0 0.0
    %229 = vmatpush1.msra.mxu0 %v178
    %230 = vmatprep.subr.mxu0 0.0
    %231 = vmatpush1.msra.mxu0 %v177
    %232 = vmatprep.subr.mxu0 0.0
    %233 = vmatpush2.msra.mxu0 0.0
    %234 = vmatprep.subr.mxu0 0.0
    %235 = vmatpush2.msra.mxu0 0.0
    %236 = vmatprep.subr.mxu0 0.0
    %237 = vmatpush2.msra.mxu0 0.0
    %238 = vmatprep.subr.mxu0 0.0
    %239 = vmatpush2.msra.mxu0 0.0
    %240 = vmatprep.subr.mxu0 0.0
    %241 = vmatpush2.msra.mxu0 0.0
    %242 = vmatprep.subr.mxu0 0.0
    %243 = vmatpush2.msra.mxu0 0.0
    %244 = vmatprep.subr.mxu0 0.0
    %245 = vmatpush2.msra.mxu0 0.0
    %246 = vmatprep.subr.mxu0 0.0
    %247 = vmatpush2.msra.mxu0 0.0
    %248 = vmatprep.subr.mxu0 0.0
    %249 = vmatpush2.msra.mxu0 0.0
    %250 = vmatprep.subr.mxu0 0.0
    %251 = vmatpush2.msra.mxu0 0.0
    %252 = vmatprep.subr.mxu0 0.0
    %253 = vmatpush2.msra.mxu0 0.0
    %254 = vmatprep.subr.mxu0 0.0
    %255 = vmatpush2.msra.mxu0 0.0
    %256 = vmatprep.subr.mxu0 0.0
    %257 = vmatpush2.msra.mxu0 0.0
    %258 = vmatprep.subr.mxu0 0.0
    %259 = vmatpush2.msra.mxu0 0.0
    %260 = vmatprep.subr.mxu0 0.0
    %261 = vmatpush2.msra.mxu0 0.0
    %262 = vmatprep.subr.mxu0 0.0
    %263 = vmatpush2.msra.mxu0 0.0
    %264 = vmatprep.mubr.f32.mxu0 0.0
    %265 = vmatmul.mubr.f32.gmra.mxu0 %v176
    %v266 = vpop.f32.mrf.mxu0
    %v267 = vadd.f32 %v198, %v266
    %v268 = vpop.f32.mrf.mxu0
    %269 = vdwg.mxu0
    %v270 = vmax.f32 %v267, 0.0
    %v271 = vld [vmem:[#allocation8] sm:$0xff]
    %v272 = vld [vmem:[#allocation8 + $0x8] sm:$0xff]
    %v273 = vld [vmem:[#allocation8 + $0x10] sm:$0xff]
    %v274 = vld [vmem:[#allocation8 + $0x18] sm:$0xff]
    %v275 = vld [vmem:[#allocation8 + $0x20] sm:$0xff]
    %v276 = vld [vmem:[#allocation8 + $0x28] sm:$0xff]
    %v277 = vld [vmem:[#allocation8 + $0x30] sm:$0xff]
    %v278 = vld [vmem:[#allocation8 + $0x38] sm:$0xff]
    %v279 = vld [vmem:[#allocation8 + $0x40] sm:$0xff]
    %v280 = vld [vmem:[#allocation8 + $0x48] sm:$0xff]
    %v281 = vld [vmem:[#allocation8 + $0x50] sm:$0xff]
    %v282 = vld [vmem:[#allocation8 + $0x58] sm:$0xff]
    %v283 = vld [vmem:[#allocation8 + $0x60] sm:$0xff]
    %v284 = vld [vmem:[#allocation8 + $0x68] sm:$0xff]
    %v285 = vld [vmem:[#allocation8 + $0x70] sm:$0xff]
    %v286 = vld [vmem:[#allocation8 + $0x78] sm:$0xff]
    %v287 = vld [vmem:[%s6] sm:$0x1]
    %v289 = vlaneseq
    %v290 = vshrl.u32 %v289, 7
    %v291 = vsub.s32 0, %v290
    %v292 = vrot.slane %v287, %v291
    %294 = vmatprep.subr.mxu0 0.0
    %295 = vmatpush1.msra.mxu0 %v286
    %296 = vmatprep.subr.mxu0 0.0
    %297 = vmatpush1.msra.mxu0 %v285
    %298 = vmatprep.subr.mxu0 0.0
    %299 = vmatpush1.msra.mxu0 %v284
    %300 = vmatprep.subr.mxu0 0.0
    %301 = vmatpush1.msra.mxu0 %v283
    %302 = vmatprep.subr.mxu0 0.0
    %303 = vmatpush1.msra.mxu0 %v282
    %304 = vmatprep.subr.mxu0 0.0
    %305 = vmatpush1.msra.mxu0 %v281
    %306 = vmatprep.subr.mxu0 0.0
    %307 = vmatpush1.msra.mxu0 %v280
    %308 = vmatprep.subr.mxu0 0.0
    %309 = vmatpush1.msra.mxu0 %v279
    %310 = vmatprep.subr.mxu0 0.0
    %311 = vmatpush1.msra.mxu0 %v278
    %312 = vmatprep.subr.mxu0 0.0
    %313 = vmatpush1.msra.mxu0 %v277
    %314 = vmatprep.subr.mxu0 0.0
    %315 = vmatpush1.msra.mxu0 %v276
    %316 = vmatprep.subr.mxu0 0.0
    %317 = vmatpush1.msra.mxu0 %v275
    %318 = vmatprep.subr.mxu0 0.0
    %319 = vmatpush1.msra.mxu0 %v274
    %320 = vmatprep.subr.mxu0 0.0
    %321 = vmatpush1.msra.mxu0 %v273
    %322 = vmatprep.subr.mxu0 0.0
    %323 = vmatpush1.msra.mxu0 %v272
    %324 = vmatprep.subr.mxu0 0.0
    %325 = vmatpush1.msra.mxu0 %v271
    %326 = vmatprep.subr.mxu0 0.0
    %327 = vmatpush2.msra.mxu0 0.0
    %328 = vmatprep.subr.mxu0 0.0
    %329 = vmatpush2.msra.mxu0 0.0
    %330 = vmatprep.subr.mxu0 0.0
    %331 = vmatpush2.msra.mxu0 0.0
    %332 = vmatprep.subr.mxu0 0.0
    %333 = vmatpush2.msra.mxu0 0.0
    %334 = vmatprep.subr.mxu0 0.0
    %335 = vmatpush2.msra.mxu0 0.0
    %336 = vmatprep.subr.mxu0 0.0
    %337 = vmatpush2.msra.mxu0 0.0
    %338 = vmatprep.subr.mxu0 0.0
    %339 = vmatpush2.msra.mxu0 0.0
    %340 = vmatprep.subr.mxu0 0.0
    %341 = vmatpush2.msra.mxu0 0.0
    %342 = vmatprep.subr.mxu0 0.0
    %343 = vmatpush2.msra.mxu0 0.0
    %344 = vmatprep.subr.mxu0 0.0
    %345 = vmatpush2.msra.mxu0 0.0
    %346 = vmatprep.subr.mxu0 0.0
    %347 = vmatpush2.msra.mxu0 0.0
    %348 = vmatprep.subr.mxu0 0.0
    %349 = vmatpush2.msra.mxu0 0.0
    %350 = vmatprep.subr.mxu0 0.0
    %351 = vmatpush2.msra.mxu0 0.0
    %352 = vmatprep.subr.mxu0 0.0
    %353 = vmatpush2.msra.mxu0 0.0
    %354 = vmatprep.subr.mxu0 0.0
    %355 = vmatpush2.msra.mxu0 0.0
    %356 = vmatprep.subr.mxu0 0.0
    %357 = vmatpush2.msra.mxu0 0.0
    %358 = vmatprep.mubr.f32.mxu0 0.0
    %359 = vmatmul.mubr.f32.gmra.mxu0 %v270
    %v360 = vpop.f32.mrf.mxu0
    %v361 = vadd.f32 %v292, %v360
    %v362 = vpop.f32.mrf.mxu0
    %363 = vdwg.mxu0
    %v364 = vmax.f32 %v361, 0.0
    %v365 = vld [vmem:[%s7] sm:$0x1]
    %v367 = vlaneseq
    %v368 = vshrl.u32 %v367, 7
    %v369 = vsub.s32 0, %v368
    %v370 = vrot.slane %v365, %v369
    %v372 = vmul.f32 %v364, %v370
    %373 = vadd.xlane.f32.xlu0 %v372
    %v374 = vpop.xlane.xlu0 %373
    %v375 = vld [vmem:[#allocation2] sm:$0x1]
    %v377 = vlaneseq
    %v378 = vshrl.u32 %v377, 7
    %v379 = vsub.s32 0, %v378
    %v380 = vrot.slane %v375, %v379
    %v382 = vadd.f32 %v374, %v380
    %vm383 = vcmask 7168
    %384 = vst.msk [vmem:[%s9] sm:$0xff] %vm383, %v382
    // Predicated region
    $region54: #{tpu_custom_call.1} parent=1 // pred_check
      _
    $region55: #{tpu_custom_call.1} parent=1 // pred_check_branch
      %386 = sbr.rel (0) target = $region57
    $region56: #{tpu_custom_call.1} parent=1 // pred_region
      _
    $region57: #{tpu_custom_call.1} parent=1 // pred_fallthru
      _
    // Predicated region
    $region58: #{tpu_custom_call.1} parent=1 // pred_check
      _
    $region59: #{tpu_custom_call.1} parent=1 // pred_check_branch
      %388 = sbr.rel (0) target = $region61
    $region60: #{tpu_custom_call.1} parent=1 // pred_region
      _
    $region61: #{tpu_custom_call.1} parent=1 // pred_fallthru
      _
    %389 = vsyncpa [#allocation4], 1
    %390 = vsyncpa [#allocation6], 1
    %391 = vsyncpa [#allocation9], 1

</llo_original>
